<compile_context>
chip_gen: v7x
topology: tpu7x:2x2x1
jax: 0.10.0
libtpu: 0.0.40
codegen_flags: <defaults>
</compile_context>

<pallas_src>
import functools

import jax
import jax.numpy as jnp
from jax.experimental import pallas as pl
from jax.experimental.pallas import tpu as pltpu

_LANES = 128
_SUBLANES = 8


def _round_up(a, b):
    return ((a + b - 1) // b) * b


# ---------------------------------------------------------------------------
# Kernels
# ---------------------------------------------------------------------------
def _charb_partial_sum_kernel(x_ref, y_ref, o_ref, *, eps,
                              valid_rows_last, mask_last_tile):
    """Writes a per-tile (8, 128) partial sum of sqrt((x-y)^2 + eps)."""
    diff = x_ref[...].astype(jnp.float32) - y_ref[...].astype(jnp.float32)
    err = jnp.sqrt(diff * diff + eps)
    tr, lanes = err.shape

    # Pure-VPU partial reduction: fold the tile down to one (8, lanes) vreg.
    o_ref[...] = jnp.sum(err.reshape(tr // _SUBLANES, _SUBLANES, lanes), axis=0)

    if mask_last_tile:
        # Only the last grid step can see rows past the real array (Pallas
        # edge padding -> undefined data). Mask them there, and only there.
        @pl.when(pl.program_id(0) == pl.num_programs(0) - 1)
        def _():
            row = jax.lax.broadcasted_iota(jnp.int32, err.shape, 0)
            err_m = jnp.where(row < valid_rows_last, err, 0.0)
            o_ref[...] = jnp.sum(
                err_m.reshape(tr // _SUBLANES, _SUBLANES, lanes), axis=0)


def _charb_elementwise_kernel(x_ref, y_ref, o_ref, *, eps):
    diff = x_ref[...].astype(jnp.float32) - y_ref[...].astype(jnp.float32)
    o_ref[...] = jnp.sqrt(diff * diff + eps).astype(o_ref.dtype)


# ---------------------------------------------------------------------------
# Wrappers
# ---------------------------------------------------------------------------
def _reduce_loss(x, y, eps, tile_rows):
    total = int(x.size)
    tile_elems = tile_rows * _LANES

    xf = x.reshape(-1)
    yf = y.reshape(-1)

    if total >= tile_elems:
        # Large input: never copy unless the lane dimension is ragged.
        padded_total = _round_up(total, _LANES)
    else:
        # Small input (< one tile): pad to a sublane-aligned slab; copy is tiny.
        padded_total = _round_up(total, _SUBLANES * _LANES)

    pad = padded_total - total
    if pad:
        xf = jnp.pad(xf, (0, pad))
        yf = jnp.pad(yf, (0, pad))

    rows = padded_total // _LANES
    x2 = xf.reshape(rows, _LANES)
    y2 = yf.reshape(rows, _LANES)

    tr = min(tile_rows, rows)                 # always a multiple of 8
    num_tiles = pl.cdiv(rows, tr)
    valid_rows_last = rows - (num_tiles - 1) * tr
    mask_last_tile = valid_rows_last != tr    # only the final (OOB) tile

    kernel = functools.partial(
        _charb_partial_sum_kernel,
        eps=eps,
        valid_rows_last=int(valid_rows_last),
        mask_last_tile=bool(mask_last_tile),
    )

    partials = pl.pallas_call(
        kernel,
        out_shape=jax.ShapeDtypeStruct((num_tiles * _SUBLANES, _LANES),
                                       jnp.float32),
        grid_spec=pltpu.PrefetchScalarGridSpec(
            num_scalar_prefetch=0,
            grid=(num_tiles,),
            in_specs=[
                pl.BlockSpec((tr, _LANES), lambda i: (i, 0)),
                pl.BlockSpec((tr, _LANES), lambda i: (i, 0)),
            ],
            out_specs=pl.BlockSpec((_SUBLANES, _LANES), lambda i: (i, 0)),
        ),
        compiler_params=pltpu.CompilerParams(
            dimension_semantics=("parallel",)),
    )(x2, y2)

    total_sum = jnp.sum(partials, dtype=jnp.float32)
    if pad:
        # Explicitly padded zeros each contribute exactly sqrt(eps).
        total_sum = total_sum - jnp.float32(pad) * jnp.sqrt(jnp.float32(eps))
    return total_sum / jnp.float32(total)


def _elementwise_map(x2, y2, rows, width, eps, out_dtype, tile_rows):
    target_elems = tile_rows * _LANES
    br_target = max(1, target_elems // width)
    if rows <= br_target:
        br = rows                      # full extent: always a legal block dim
    else:
        br = max(_SUBLANES, (br_target // _SUBLANES) * _SUBLANES)
    grid = (pl.cdiv(rows, br),)

    return pl.pallas_call(
        functools.partial(_charb_elementwise_kernel, eps=eps),
        out_shape=jax.ShapeDtypeStruct((rows, width), out_dtype),
        grid_spec=pltpu.PrefetchScalarGridSpec(
            num_scalar_prefetch=0,
            grid=grid,
            in_specs=[
                pl.BlockSpec((br, width), lambda i: (i, 0)),
                pl.BlockSpec((br, width), lambda i: (i, 0)),
            ],
            out_specs=pl.BlockSpec((br, width), lambda i: (i, 0)),
        ),
        compiler_params=pltpu.CompilerParams(
            dimension_semantics=("parallel",)),
    )(x2, y2)


def charbonnier_loss(x, y, epsilon=0.001, reduce=True, *, tile_rows=2048):
    """Pallas implementation of CharbonnierLoss.forward (NCHW or any shape)."""
    assert x.shape == y.shape, (x.shape, y.shape)
    assert tile_rows % _SUBLANES == 0
    eps = float(epsilon) * float(epsilon)
    total = int(x.size)

    if reduce:
        return _reduce_loss(x, y, eps, tile_rows)

    out_dtype = jnp.result_type(x.dtype, y.dtype)

    if total % _LANES == 0:
        # Zero-copy path: widest lane dim (multiple of 128) that divides total.
        width = _LANES
        for cand in (2048, 1024, 512, 256):
            if total % cand == 0:
                width = cand
                break
        rows = total // width
        out = _elementwise_map(x.reshape(rows, width), y.reshape(rows, width),
                               rows, width, eps, out_dtype, tile_rows)
        return out.reshape(x.shape)

    # Ragged size: pad flat arrays to a lane multiple, slice the result back.
    padded = _round_up(total, _LANES)
    rows = padded // _LANES
    xf = jnp.pad(x.reshape(-1), (0, padded - total))
    yf = jnp.pad(y.reshape(-1), (0, padded - total))
    out = _elementwise_map(xf.reshape(rows, _LANES), yf.reshape(rows, _LANES),
                           rows, _LANES, eps, out_dtype, tile_rows)
    return out.reshape(-1)[:total].reshape(x.shape)


if __name__ == "__main__":
    key = jax.random.PRNGKey(0)
    kx, ky, kx2, ky2 = jax.random.split(key, 4)

    # ---- NCHW case that divides cleanly (zero-copy fast path) ----
    x = jax.random.normal(kx, (2, 4, 16, 16), dtype=jnp.float32)
    y = jax.random.normal(ky, (2, 4, 16, 16), dtype=jnp.float32)

    loss = jax.block_until_ready(charbonnier_loss(x, y, epsilon=0.001, reduce=True))
    err = jax.block_until_ready(charbonnier_loss(x, y, epsilon=0.001, reduce=False))

    eps = 0.001 * 0.001
    ref_err = jnp.sqrt((x - y) ** 2 + eps)
    ref_loss = jnp.mean(ref_err)
    assert jnp.allclose(loss, ref_loss, rtol=1e-5, atol=1e-6), (loss, ref_loss)
    assert jnp.allclose(err, ref_err, rtol=1e-5, atol=1e-6)

    # ---- Ragged case: exercises pad correction, masked last tile, and the
    # pad/slice elementwise fallback (tile_rows=8 forces a partial last tile).
    xr = jax.random.normal(kx2, (2, 3, 15, 17), dtype=jnp.float32)
    yr = jax.random.normal(ky2, (2, 3, 15, 17), dtype=jnp.float32)

    loss_r = jax.block_until_ready(charbonnier_loss(xr, yr, reduce=True))
    loss_r_small = jax.block_until_ready(
        charbonnier_loss(xr, yr, reduce=True, tile_rows=8))
    err_r = jax.block_until_ready(charbonnier_loss(xr, yr, reduce=False))

    ref_err_r = jnp.sqrt((xr - yr) ** 2 + eps)
    ref_loss_r = jnp.mean(ref_err_r)
    assert jnp.allclose(loss_r, ref_loss_r, rtol=1e-5, atol=1e-6), (loss_r, ref_loss_r)
    assert jnp.allclose(loss_r_small, ref_loss_r, rtol=1e-5, atol=1e-6), (
        loss_r_small, ref_loss_r)
    assert jnp.allclose(err_r, ref_err_r, rtol=1e-5, atol=1e-6)

    print("KERNEL_OK")
</pallas_src>

<mosaic_0001>
module attributes {stable_mosaic.version = 11 : i64} {
  func.func @_charb_partial_sum_kernel(%arg0: i32, %arg1: memref<16x128xf32, #tpu.memory_space<vmem>>, %arg2: memref<16x128xf32, #tpu.memory_space<vmem>>, %arg3: memref<8x128xf32, #tpu.memory_space<vmem>>) attributes {dimension_semantics = [#tpu.dimension_semantics<parallel>], iteration_bounds = array<i64: 1>, scalar_prefetch = 0 : i64, scratch_operands = 0 : i64, tpu.core_type = #tpu.core_type<tc>, window_params = [{transform_indices = @transform_0, window_bounds = array<i64: 16, 128>}, {transform_indices = @transform_1, window_bounds = array<i64: 16, 128>}, {transform_indices = @transform_2, window_bounds = array<i64: 8, 128>}]} {
    %c0 = arith.constant 0 : index
    %c0_0 = arith.constant 0 : index
    %0 = vector.load %arg1[%c0, %c0_0] : memref<16x128xf32, #tpu.memory_space<vmem>>, vector<16x128xf32>
    %c0_1 = arith.constant 0 : index
    %c0_2 = arith.constant 0 : index
    %1 = vector.load %arg2[%c0_1, %c0_2] : memref<16x128xf32, #tpu.memory_space<vmem>>, vector<16x128xf32>
    %2 = arith.subf %0, %1 : vector<16x128xf32>
    %3 = arith.mulf %2, %2 : vector<16x128xf32>
    %cst = arith.constant 9.99999997E-7 : f32
    %4 = vector.broadcast %cst : f32 to vector<16x128xf32>
    %5 = arith.addf %3, %4 : vector<16x128xf32>
    %6 = math.sqrt %5 : vector<16x128xf32>
    %7 = vector.shape_cast %6 : vector<16x128xf32> to vector<2x8x128xf32>
    %cst_3 = arith.constant dense<0.000000e+00> : vector<8x128xf32>
    %8 = vector.multi_reduction <add>, %7, %cst_3 [0] : vector<2x8x128xf32> to vector<8x128xf32>
    %c0_4 = arith.constant 0 : index
    %c0_5 = arith.constant 0 : index
    %9 = vector.load %arg3[%c0_4, %c0_5] : memref<8x128xf32, #tpu.memory_space<vmem>>, vector<8x128xf32>
    tpu.vector_store %arg3[%c0_4, %c0_5], %8 {strides = array<i32>} : memref<8x128xf32, #tpu.memory_space<vmem>>, vector<8x128xf32>,
    return
  }
  func.func @transform_0(%arg0: i32) -> (i32, i32) {
    %c0_i32 = arith.constant 0 : i32
    %c0_i32_0 = arith.constant 0 : i32
    return %arg0, %c0_i32 : i32, i32
  }
  func.func @transform_1(%arg0: i32) -> (i32, i32) {
    %c0_i32 = arith.constant 0 : i32
    %c0_i32_0 = arith.constant 0 : i32
    return %arg0, %c0_i32 : i32, i32
  }
  func.func @transform_2(%arg0: i32) -> (i32, i32) {
    %c0_i32 = arith.constant 0 : i32
    %c0_i32_0 = arith.constant 0 : i32
    return %arg0, %c0_i32 : i32, i32
  }
}

</mosaic_0001>

<llo_original>
// kernel: tpu_custom_call.1
$region0: #{tpu_custom_call.1}
  #allocation0 [shape = 'u32[]', space=smem, size = 0x4, offset = 0x4, fixed_abs, tag = 'smem constant byte address 0x4 - core index']
  #allocation1 [shape = 'u32[144,128]{1,0:T(1,128)}', space=vmem, size = 0x12000, scoped, tag = 'internal scratch']
  %s0 = inlined_call_operand.hbm [shape: f32[16,128], index: 0, kind: input, shape index: {}]
  %s1 = inlined_call_operand.hbm [shape: f32[16,128], index: 1, kind: input, shape index: {}]
  %s2 = inlined_call_operand.hbm [shape: f32[8,128], index: 2, kind: output, shape index: {}]
  %s3 = sld [smem:[#allocation0]]
  $region26: #{tpu_custom_call.1} parent=0
    _
  %s5 = ssub.s32 1, %s3
  %s6 = scalar_select 0, %s5, %s3
  $region1: #{tpu_custom_call.1} parent=0
    #allocation2 [shape = 'u8[8192]{0}', space=vmem, size = 0x2000, scoped, tag = 'input window, operand 0, single buffered']
    #allocation3 [shape = 's32[1]{0}', space=sflag, size = 0x4, scoped, tag = 'scoped memory for tpu_custom_call.1']
    #allocation4 [shape = 's32[1]{0}', space=sflag, size = 0x4, scoped, tag = 'scoped memory for tpu_custom_call.1']
    #allocation5 [shape = 'u8[8192]{0}', space=vmem, size = 0x2000, scoped, tag = 'input window, operand 1, single buffered']
    #allocation6 [shape = 's32[1]{0}', space=sflag, size = 0x4, scoped, tag = 'scoped memory for tpu_custom_call.1']
    #allocation7 [shape = 'u8[4096]{0}', space=vmem, size = 0x1000, scoped, tag = 'output window, operand 0, single buffered']
    %7 = vsyncpa [#allocation3], 0
    %8 = vsyncpa [#allocation6], 0
    %9 = vsyncpa [#allocation4], 0
    // Predicated region
    $region2: #{tpu_custom_call.1} parent=1 // pred_check
      _
    $region3: #{tpu_custom_call.1} parent=1 // pred_check_branch
      %11 = sbr.rel (0) target = $region5
    $region4: #{tpu_custom_call.1} parent=1 // pred_region
      %s13 = ssub.s32 256, 256
      %14 = vsyncadd [#allocation3], %s13
      %s15 = sshll.u32 [#allocation2], 4
      %s16 = int_to_ptr.vmem [resolvable:$true] %s15
      %21 = dma.hbm_to_vmem [thread:$0]  %s0, 256, %s16, [#allocation3], 128, 128, 8
    $region5: #{tpu_custom_call.1} parent=1 // pred_fallthru
      _
    // Predicated region
    $region6: #{tpu_custom_call.1} parent=1 // pred_check
      _
    $region7: #{tpu_custom_call.1} parent=1 // pred_check_branch
      %23 = sbr.rel (0) target = $region9
    $region8: #{tpu_custom_call.1} parent=1 // pred_region
      %s25 = ssub.s32 256, 256
      %26 = vsyncadd [#allocation6], %s25
      %s27 = sshll.u32 [#allocation5], 4
      %s28 = int_to_ptr.vmem [resolvable:$true] %s27
      %33 = dma.hbm_to_vmem [thread:$0]  %s1, 256, %s28, [#allocation6], 128, 128, 8
    $region9: #{tpu_custom_call.1} parent=1 // pred_fallthru
      _
    // Predicated region
    $region10: #{tpu_custom_call.1} parent=1 // pred_check
      _
    $region11: #{tpu_custom_call.1} parent=1 // pred_check_branch
      %35 = sbr.rel (0) target = $region13
    $region12: #{tpu_custom_call.1} parent=1 // pred_region
      %36 = dma.done [#allocation3], 256
    $region13: #{tpu_custom_call.1} parent=1 // pred_fallthru
      _
    // Predicated region
    $region14: #{tpu_custom_call.1} parent=1 // pred_check
      _
    $region15: #{tpu_custom_call.1} parent=1 // pred_check_branch
      %38 = sbr.rel (0) target = $region17
    $region16: #{tpu_custom_call.1} parent=1 // pred_region
      %39 = dma.done [#allocation6], 256
    $region17: #{tpu_custom_call.1} parent=1 // pred_fallthru
      _
    %v40 = vld [vmem:[#allocation2] sm:$0xff]
    %v41 = vld [vmem:[#allocation2 + $0x8] sm:$0xff]
    %v42 = vld [vmem:[#allocation5] sm:$0xff]
    %v43 = vld [vmem:[#allocation5 + $0x8] sm:$0xff]
    %v44 = vsub.f32 %v40, %v42
    %v45 = vsub.f32 %v41, %v43
    %v46 = vmul.f32 %v44, %v44
    %v47 = vmul.f32 %v45, %v45
    %v48 = vadd.f32 %v46, 1e-06
    %v49 = vadd.f32 %v47, 1e-06
    %v50 = vrsqrt.pop %v48
    %v51 = vmul.f32 %v48, %v50
    %vm52 = vcmp.eq.f32.partialorder %v48, inf
    %v53 = vsel %vm52, %v48, %v51
    %vm54 = vcmp.eq.f32.partialorder %v48, 0.0
    %v55 = vand.u32 %v48, 2147483648
    %v56 = vsel %vm54, %v55, %v53
    %v57 = vrsqrt.pop %v49
    %v58 = vmul.f32 %v49, %v57
    %vm59 = vcmp.eq.f32.partialorder %v49, inf
    %v60 = vsel %vm59, %v49, %v58
    %vm61 = vcmp.eq.f32.partialorder %v49, 0.0
    %v62 = vand.u32 %v49, 2147483648
    %v63 = vsel %vm61, %v62, %v60
    %v64 = vadd.f32 %v56, %v63
    %65 = vst [vmem:[#allocation7] sm:$0xff] %v64
    // Predicated region
    $region18: #{tpu_custom_call.1} parent=1 // pred_check
      _
    $region19: #{tpu_custom_call.1} parent=1 // pred_check_branch
      %67 = sbr.rel (0) target = $region21
    $region20: #{tpu_custom_call.1} parent=1 // pred_region
      %s69 = ssub.s32 128, 128
      %70 = vsyncadd [#allocation4], %s69
      %s72 = sshll.u32 [#allocation7], 4
      %s73 = int_to_ptr.vmem [resolvable:$true] %s72
      %75 = dma.vmem_to_hbm [thread:$0]  %s73, 128, %s2, [#allocation4]
    $region21: #{tpu_custom_call.1} parent=1 // pred_fallthru
      _
    // Predicated region
    $region22: #{tpu_custom_call.1} parent=1 // pred_check
      _
    $region23: #{tpu_custom_call.1} parent=1 // pred_check_branch
      %77 = sbr.rel (0) target = $region25
    $region24: #{tpu_custom_call.1} parent=1 // pred_region
      %78 = dma.done [#allocation4], 128
    $region25: #{tpu_custom_call.1} parent=1 // pred_fallthru
      _
    %79 = vsyncpa [#allocation3], 1
    %80 = vsyncpa [#allocation6], 1
    %81 = vsyncpa [#allocation4], 1

</llo_original>
